<compile_context>
chip_gen: v6e
topology: v6e:2x2x1
jax: 0.10.0
libtpu: 0.0.40
codegen_flags: <defaults>
</compile_context>

<pallas_src>
import math

import jax
import jax.numpy as jnp
import numpy as np
from jax.experimental import pallas as pl
from jax.experimental.pallas import tpu as pltpu


_EPS = 1e-6
_INV_SQRT2 = 1.0 / math.sqrt(2.0)


def _gelu(x):
    # exact (erf-based) GELU, matching torch.nn.GELU() default
    return 0.5 * x * (1.0 + jax.lax.erf(x * _INV_SQRT2))


# ---------------------------------------------------------------------------
# fused Pallas kernel: AvgPool1d(2,2) + (Conv1d(k=3,p=1) -> Norm -> GELU) x 2
# ---------------------------------------------------------------------------
def _downsampling_kernel(x_ref, w1_ref, b1_ref, a1_ref, g1_ref,
                         w2_ref, b2_ref, a2_ref, g2_ref, o_ref):
    # batch dim is squeezed by the BlockSpec: x_ref is (L, Cin), o_ref is (Lh, Cout)
    Lh = o_ref.shape[0]

    # --- AvgPool1d(kernel=2, stride=2): sublane-strided loads ---
    x_even = x_ref[pl.ds(0, Lh, stride=2), :]     # rows 0, 2, 4, ...
    x_odd = x_ref[pl.ds(1, Lh, stride=2), :]      # rows 1, 3, 5, ...
    h = 0.5 * (x_even + x_odd)                    # (Lh, Cin), f32

    # one-column edge masks for the zero-padded k=3 conv shifts
    row = jax.lax.broadcasted_iota(jnp.int32, (Lh, 1), 0)
    is_first = row == 0
    is_last = row == Lh - 1

    def conv3_norm_gelu(h, w_bf16, b, alpha, beta):
        # shifted copies via XLU roll + mask:  h_prev[i] = h[i-1] (row 0 -> 0),
        #                                      h_next[i] = h[i+1] (last row -> 0)
        h_prev = jnp.where(is_first, 0.0, pltpu.roll(h, 1, axis=0))
        h_next = jnp.where(is_last, 0.0, pltpu.roll(h, Lh - 1, axis=0))

        # bf16 MXU operands (weights already bf16), f32 accumulation
        y = (jnp.dot(h_prev.astype(jnp.bfloat16), w_bf16[0],
                     preferred_element_type=jnp.float32)
             + jnp.dot(h.astype(jnp.bfloat16), w_bf16[1],
                       preferred_element_type=jnp.float32)
             + jnp.dot(h_next.astype(jnp.bfloat16), w_bf16[2],
                       preferred_element_type=jnp.float32)
             + b)                                  # (Lh, Cout), f32

        # Norm over channels: mean, unbiased std (N-1), eps added to std (f32, VPU/XLU)
        c = y.shape[-1]
        mean = jnp.mean(y, axis=-1, keepdims=True)
        d = y - mean
        var = jnp.sum(d * d, axis=-1, keepdims=True) * (1.0 / (c - 1))
        inv = pl.reciprocal(jnp.sqrt(var) + _EPS, approx=True)   # EUP vrcp, ~free slot
        return _gelu(alpha * d * inv + beta)

    h = conv3_norm_gelu(h, w1_ref[...], b1_ref[...], a1_ref[...], g1_ref[...])
    h = conv3_norm_gelu(h, w2_ref[...], b2_ref[...], a2_ref[...], g2_ref[...])
    o_ref[...] = h.astype(o_ref.dtype)


# ---------------------------------------------------------------------------
# wrapper
# ---------------------------------------------------------------------------
def _replicated_spec(shape):
    # same (whole-array) block for every grid step -> stays resident in VMEM
    nd = len(shape)
    return pl.BlockSpec(shape, lambda b, _nd=nd: (0,) * _nd)


@jax.jit
def downsampling(x_ncl, p):
    """x_ncl: (B, Cin, L) -> (B, Cout, L // 2), same semantics as the PyTorch module."""
    x = jnp.transpose(x_ncl, (0, 2, 1))              # NCL -> NLC (lane-dense channels)
    B, L, Cin = x.shape
    Lh = L // 2
    Cout = p["w1"].shape[-1]

    # conv weights ride the MXU as bf16; cast once here (halves weight DMA,
    # no per-step in-kernel weight casts). Bias / Norm params stay f32.
    weights = (p["w1"].astype(jnp.bfloat16), p["b1"], p["a1"], p["g1"],
               p["w2"].astype(jnp.bfloat16), p["b2"], p["a2"], p["g2"])

    out = pl.pallas_call(
        _downsampling_kernel,
        out_shape=jax.ShapeDtypeStruct((B, Lh, Cout), jnp.float32),
        grid=(B,),
        in_specs=[pl.BlockSpec((None, L, Cin), lambda b: (b, 0, 0))]
                 + [_replicated_spec(w.shape) for w in weights],
        out_specs=pl.BlockSpec((None, Lh, Cout), lambda b: (b, 0, 0)),
        compiler_params=pltpu.CompilerParams(
            dimension_semantics=("parallel",)),       # batch across v7x's 2 TCs
    )(x, *weights)
    return jnp.transpose(out, (0, 2, 1))             # NLC -> NCL


# ---------------------------------------------------------------------------
# pure-JAX (f32) reference for validation
# ---------------------------------------------------------------------------
def _ref_norm(y, alpha, bias):
    c = y.shape[-1]
    mean = jnp.mean(y, axis=-1, keepdims=True)
    d = y - mean
    std = jnp.sqrt(jnp.sum(d * d, axis=-1, keepdims=True) / (c - 1))
    return alpha * d / (std + _EPS) + bias


def _ref_conv3(x, w, b):
    xp = jnp.pad(x, ((0, 0), (1, 1), (0, 0)))
    return (jnp.einsum("blc,cd->bld", xp[:, :-2], w[0])
            + jnp.einsum("blc,cd->bld", xp[:, 1:-1], w[1])
            + jnp.einsum("blc,cd->bld", xp[:, 2:], w[2]) + b)


def downsampling_ref(x_ncl, p):
    x = jnp.transpose(x_ncl, (0, 2, 1))
    B, L, C = x.shape
    h = x.reshape(B, L // 2, 2, C).mean(axis=2)
    h = _gelu(_ref_norm(_ref_conv3(h, p["w1"], p["b1"]), p["a1"], p["g1"]))
    h = _gelu(_ref_norm(_ref_conv3(h, p["w2"], p["b2"]), p["a2"], p["g2"]))
    return jnp.transpose(h, (0, 2, 1))


# ---------------------------------------------------------------------------
# deterministic parameter init (synthetic weights)
# ---------------------------------------------------------------------------
def init_params(key, cin, cout):
    k1, k2, k3, k4, k5, k6, k7, k8 = jax.random.split(key, 8)
    return dict(
        w1=0.1 * jax.random.normal(k1, (3, cin, cout), jnp.float32),
        b1=0.1 * jax.random.normal(k2, (1, cout), jnp.float32),
        a1=1.0 + 0.1 * jax.random.normal(k3, (1, cout), jnp.float32),
        g1=0.1 * jax.random.normal(k4, (1, cout), jnp.float32),
        w2=0.1 * jax.random.normal(k5, (3, cout, cout), jnp.float32),
        b2=0.1 * jax.random.normal(k6, (1, cout), jnp.float32),
        a2=1.0 + 0.1 * jax.random.normal(k7, (1, cout), jnp.float32),
        g2=0.1 * jax.random.normal(k8, (1, cout), jnp.float32),
    )


# ---------------------------------------------------------------------------
if __name__ == "__main__":
    B, C_IN, C_OUT, L = 2, 8, 16, 16            # small synthetic shapes
    key = jax.random.PRNGKey(0)
    kx, kp = jax.random.split(key)
    x = jax.random.normal(kx, (B, C_IN, L), jnp.float32)   # NCL, like PyTorch
    params = init_params(kp, C_IN, C_OUT)

    out = jax.block_until_ready(downsampling(x, params))
    ref = jax.block_until_ready(downsampling_ref(x, params))

    assert out.shape == (B, C_OUT, L // 2), out.shape
    diff = float(np.max(np.abs(np.asarray(out) - np.asarray(ref))))
    # bf16 MXU operands + approx reciprocal in the kernel vs. a pure-f32 reference,
    # so the tolerance is loosened accordingly.
    if not np.allclose(np.asarray(out), np.asarray(ref), rtol=5e-2, atol=5e-2):
        raise AssertionError(
            f"Pallas output mismatch vs JAX reference, max|diff|={diff}")
    print("KERNEL_OK")
</pallas_src>

<mosaic_0001>
module attributes {stable_mosaic.version = 11 : i64} {
  func.func @_downsampling_kernel(%arg0: i32, %arg1: memref<1x16x8xf32, #tpu.memory_space<vmem>>, %arg2: memref<3x8x16xbf16, #tpu.memory_space<vmem>>, %arg3: memref<1x16xf32, #tpu.memory_space<vmem>>, %arg4: memref<1x16xf32, #tpu.memory_space<vmem>>, %arg5: memref<1x16xf32, #tpu.memory_space<vmem>>, %arg6: memref<3x16x16xbf16, #tpu.memory_space<vmem>>, %arg7: memref<1x16xf32, #tpu.memory_space<vmem>>, %arg8: memref<1x16xf32, #tpu.memory_space<vmem>>, %arg9: memref<1x16xf32, #tpu.memory_space<vmem>>, %arg10: memref<1x8x16xf32, #tpu.memory_space<vmem>>) attributes {dimension_semantics = [#tpu.dimension_semantics<parallel>], iteration_bounds = array<i64: 2>, scalar_prefetch = 0 : i64, scratch_operands = 0 : i64, tpu.core_type = #tpu.core_type<tc>, window_params = [{transform_indices = @transform_0, window_bounds = array<i64: 1, 16, 8>}, {pipeline_mode = #tpu.pipeline_mode<synchronous>, transform_indices = @transform_1, window_bounds = array<i64: 3, 8, 16>}, {pipeline_mode = #tpu.pipeline_mode<synchronous>, transform_indices = @transform_2, window_bounds = array<i64: 1, 16>}, {pipeline_mode = #tpu.pipeline_mode<synchronous>, transform_indices = @transform_3, window_bounds = array<i64: 1, 16>}, {pipeline_mode = #tpu.pipeline_mode<synchronous>, transform_indices = @transform_4, window_bounds = array<i64: 1, 16>}, {pipeline_mode = #tpu.pipeline_mode<synchronous>, transform_indices = @transform_5, window_bounds = array<i64: 3, 16, 16>}, {pipeline_mode = #tpu.pipeline_mode<synchronous>, transform_indices = @transform_6, window_bounds = array<i64: 1, 16>}, {pipeline_mode = #tpu.pipeline_mode<synchronous>, transform_indices = @transform_7, window_bounds = array<i64: 1, 16>}, {pipeline_mode = #tpu.pipeline_mode<synchronous>, transform_indices = @transform_8, window_bounds = array<i64: 1, 16>}, {transform_indices = @transform_9, window_bounds = array<i64: 1, 8, 16>}]} {
    %c0 = arith.constant 0 : index
    %c0_0 = arith.constant 0 : index
    %c0_1 = arith.constant 0 : index
    %0 = tpu.strided_load %arg1[%c0, %c0_0, %c0_1] {strides = array<i32: 1, 2, 1>} : memref<1x16x8xf32, #tpu.memory_space<vmem>>, vector<1x8x8xf32>
    %1 = vector.shape_cast %0 : vector<1x8x8xf32> to vector<8x8xf32>
    %c0_2 = arith.constant 0 : index
    %c1 = arith.constant 1 : index
    %c0_3 = arith.constant 0 : index
    %2 = tpu.strided_load %arg1[%c0_2, %c1, %c0_3] {strides = array<i32: 1, 2, 1>} : memref<1x16x8xf32, #tpu.memory_space<vmem>>, vector<1x8x8xf32>
    %3 = vector.shape_cast %2 : vector<1x8x8xf32> to vector<8x8xf32>
    %4 = arith.addf %1, %3 : vector<8x8xf32>
    %cst = arith.constant 5.000000e-01 : f32
    %5 = vector.broadcast %cst : f32 to vector<8x8xf32>
    %6 = arith.mulf %5, %4 : vector<8x8xf32>
    %7 = tpu.iota {dimensions = array<i32: 0>} : vector<8x1xi32>
    %c0_i32 = arith.constant 0 : i32
    %8 = vector.broadcast %c0_i32 : i32 to vector<8x1xi32>
    %9 = arith.cmpi eq, %7, %8 : vector<8x1xi32>
    %c7_i32 = arith.constant 7 : i32
    %10 = vector.broadcast %c7_i32 : i32 to vector<8x1xi32>
    %11 = arith.cmpi eq, %7, %10 : vector<8x1xi32>
    %c0_4 = arith.constant 0 : index
    %c0_5 = arith.constant 0 : index
    %c0_6 = arith.constant 0 : index
    %12 = vector.load %arg2[%c0_4, %c0_5, %c0_6] : memref<3x8x16xbf16, #tpu.memory_space<vmem>>, vector<3x8x16xbf16>
    %c0_7 = arith.constant 0 : index
    %c0_8 = arith.constant 0 : index
    %13 = vector.load %arg3[%c0_7, %c0_8] : memref<1x16xf32, #tpu.memory_space<vmem>>, vector<1x16xf32>
    %c0_9 = arith.constant 0 : index
    %c0_10 = arith.constant 0 : index
    %14 = vector.load %arg4[%c0_9, %c0_10] : memref<1x16xf32, #tpu.memory_space<vmem>>, vector<1x16xf32>
    %c0_11 = arith.constant 0 : index
    %c0_12 = arith.constant 0 : index
    %15 = vector.load %arg5[%c0_11, %c0_12] : memref<1x16xf32, #tpu.memory_space<vmem>>, vector<1x16xf32>
    %c1_i32 = arith.constant 1 : i32
    %16 = tpu.dynamic_rotate %6 by %c1_i32 dim 0 : vector<8x8xf32>, i32 -> vector<8x8xf32>
    %cst_13 = arith.constant 0.000000e+00 : f32
    %17 = vector.shape_cast %9 : vector<8x1xi1> to vector<8x1xi1>
    %18 = vector.broadcast %17 : vector<8x1xi1> to vector<8x8xi1>
    %19 = vector.broadcast %cst_13 : f32 to vector<8x8xf32>
    %20 = arith.select %18, %19, %16 : vector<8x8xi1>, vector<8x8xf32>
    %c7_i32_14 = arith.constant 7 : i32
    %21 = tpu.dynamic_rotate %6 by %c7_i32_14 dim 0 : vector<8x8xf32>, i32 -> vector<8x8xf32>
    %cst_15 = arith.constant 0.000000e+00 : f32
    %22 = vector.shape_cast %11 : vector<8x1xi1> to vector<8x1xi1>
    %23 = vector.broadcast %22 : vector<8x1xi1> to vector<8x8xi1>
    %24 = vector.broadcast %cst_15 : f32 to vector<8x8xf32>
    %25 = arith.select %23, %24, %21 : vector<8x8xi1>, vector<8x8xf32>
    %26 = arith.truncf %20 : vector<8x8xf32> to vector<8x8xbf16>
    %27 = vector.extract_strided_slice %12 {offsets = [0, 0, 0], sizes = [1, 8, 16], strides = [1, 1, 1]} : vector<3x8x16xbf16> to vector<1x8x16xbf16>
    %28 = vector.shape_cast %27 : vector<1x8x16xbf16> to vector<8x16xbf16>
    %cst_16 = arith.constant dense<0.000000e+00> : vector<8x16xf32>
    %29 = tpu.matmul %26, %28, %cst_16 {dimension_numbers = #tpu.dot_dimension_numbers<[1], [0], [0], [1], [0, 0, 1, 1], [], []>} : vector<8x8xbf16>, vector<8x16xbf16>, vector<8x16xf32> -> vector<8x16xf32>
    %30 = arith.truncf %6 : vector<8x8xf32> to vector<8x8xbf16>
    %31 = vector.extract_strided_slice %12 {offsets = [1, 0, 0], sizes = [1, 8, 16], strides = [1, 1, 1]} : vector<3x8x16xbf16> to vector<1x8x16xbf16>
    %32 = vector.shape_cast %31 : vector<1x8x16xbf16> to vector<8x16xbf16>
    %cst_17 = arith.constant dense<0.000000e+00> : vector<8x16xf32>
    %33 = tpu.matmul %30, %32, %cst_17 {dimension_numbers = #tpu.dot_dimension_numbers<[1], [0], [0], [1], [0, 0, 1, 1], [], []>} : vector<8x8xbf16>, vector<8x16xbf16>, vector<8x16xf32> -> vector<8x16xf32>
    %34 = arith.addf %29, %33 : vector<8x16xf32>
    %35 = arith.truncf %25 : vector<8x8xf32> to vector<8x8xbf16>
    %36 = vector.extract_strided_slice %12 {offsets = [2, 0, 0], sizes = [1, 8, 16], strides = [1, 1, 1]} : vector<3x8x16xbf16> to vector<1x8x16xbf16>
    %37 = vector.shape_cast %36 : vector<1x8x16xbf16> to vector<8x16xbf16>
    %cst_18 = arith.constant dense<0.000000e+00> : vector<8x16xf32>
    %38 = tpu.matmul %35, %37, %cst_18 {dimension_numbers = #tpu.dot_dimension_numbers<[1], [0], [0], [1], [0, 0, 1, 1], [], []>} : vector<8x8xbf16>, vector<8x16xbf16>, vector<8x16xf32> -> vector<8x16xf32>
    %39 = arith.addf %34, %38 : vector<8x16xf32>
    %40 = vector.broadcast %13 : vector<1x16xf32> to vector<8x16xf32>
    %41 = arith.addf %39, %40 : vector<8x16xf32>
    %cst_19 = arith.constant dense<0.000000e+00> : vector<8xf32>
    %42 = vector.multi_reduction <add>, %41, %cst_19 [1] : vector<8x16xf32> to vector<8xf32>
    %43 = vector.shape_cast %42 : vector<8xf32> to vector<8x1xf32>
    %cst_20 = arith.constant 1.600000e+01 : f32
    %44 = vector.broadcast %cst_20 : f32 to vector<8x1xf32>
    %45 = arith.divf %43, %44 : vector<8x1xf32>
    %46 = vector.broadcast %45 : vector<8x1xf32> to vector<8x16xf32>
    %47 = arith.subf %41, %46 : vector<8x16xf32>
    %48 = arith.mulf %47, %47 : vector<8x16xf32>
    %cst_21 = arith.constant dense<0.000000e+00> : vector<8xf32>
    %49 = vector.multi_reduction <add>, %48, %cst_21 [1] : vector<8x16xf32> to vector<8xf32>
    %50 = vector.shape_cast %49 : vector<8xf32> to vector<8x1xf32>
    %cst_22 = arith.constant 0.0666666701 : f32
    %51 = vector.broadcast %cst_22 : f32 to vector<8x1xf32>
    %52 = arith.mulf %50, %51 : vector<8x1xf32>
    %53 = math.sqrt %52 : vector<8x1xf32>
    %cst_23 = arith.constant 9.99999997E-7 : f32
    %54 = vector.broadcast %cst_23 : f32 to vector<8x1xf32>
    %55 = arith.addf %53, %54 : vector<8x1xf32>
    %56 = tpu.reciprocal %55 {approx = true} : vector<8x1xf32> -> vector<8x1xf32>
    %57 = vector.broadcast %14 : vector<1x16xf32> to vector<8x16xf32>
    %58 = arith.mulf %57, %47 : vector<8x16xf32>
    %59 = vector.broadcast %56 : vector<8x1xf32> to vector<8x16xf32>
    %60 = arith.mulf %58, %59 : vector<8x16xf32>
    %61 = vector.broadcast %15 : vector<1x16xf32> to vector<8x16xf32>
    %62 = arith.addf %60, %61 : vector<8x16xf32>
    %cst_24 = arith.constant 5.000000e-01 : f32
    %63 = vector.broadcast %cst_24 : f32 to vector<8x16xf32>
    %64 = arith.mulf %63, %62 : vector<8x16xf32>
    %cst_25 = arith.constant 0.707106769 : f32
    %65 = vector.broadcast %cst_25 : f32 to vector<8x16xf32>
    %66 = arith.mulf %62, %65 : vector<8x16xf32>
    %67 = math.erf %66 : vector<8x16xf32>
    %cst_26 = arith.constant 1.000000e+00 : f32
    %68 = vector.broadcast %cst_26 : f32 to vector<8x16xf32>
    %69 = arith.addf %68, %67 : vector<8x16xf32>
    %70 = arith.mulf %64, %69 : vector<8x16xf32>
    %c0_27 = arith.constant 0 : index
    %c0_28 = arith.constant 0 : index
    %c0_29 = arith.constant 0 : index
    %71 = vector.load %arg6[%c0_27, %c0_28, %c0_29] : memref<3x16x16xbf16, #tpu.memory_space<vmem>>, vector<3x16x16xbf16>
    %c0_30 = arith.constant 0 : index
    %c0_31 = arith.constant 0 : index
    %72 = vector.load %arg7[%c0_30, %c0_31] : memref<1x16xf32, #tpu.memory_space<vmem>>, vector<1x16xf32>
    %c0_32 = arith.constant 0 : index
    %c0_33 = arith.constant 0 : index
    %73 = vector.load %arg8[%c0_32, %c0_33] : memref<1x16xf32, #tpu.memory_space<vmem>>, vector<1x16xf32>
    %c0_34 = arith.constant 0 : index
    %c0_35 = arith.constant 0 : index
    %74 = vector.load %arg9[%c0_34, %c0_35] : memref<1x16xf32, #tpu.memory_space<vmem>>, vector<1x16xf32>
    %c1_i32_36 = arith.constant 1 : i32
    %75 = tpu.dynamic_rotate %70 by %c1_i32_36 dim 0 : vector<8x16xf32>, i32 -> vector<8x16xf32>
    %cst_37 = arith.constant 0.000000e+00 : f32
    %76 = vector.shape_cast %9 : vector<8x1xi1> to vector<8x1xi1>
    %77 = vector.broadcast %76 : vector<8x1xi1> to vector<8x16xi1>
    %78 = vector.broadcast %cst_37 : f32 to vector<8x16xf32>
    %79 = arith.select %77, %78, %75 : vector<8x16xi1>, vector<8x16xf32>
    %c7_i32_38 = arith.constant 7 : i32
    %80 = tpu.dynamic_rotate %70 by %c7_i32_38 dim 0 : vector<8x16xf32>, i32 -> vector<8x16xf32>
    %cst_39 = arith.constant 0.000000e+00 : f32
    %81 = vector.shape_cast %11 : vector<8x1xi1> to vector<8x1xi1>
    %82 = vector.broadcast %81 : vector<8x1xi1> to vector<8x16xi1>
    %83 = vector.broadcast %cst_39 : f32 to vector<8x16xf32>
    %84 = arith.select %82, %83, %80 : vector<8x16xi1>, vector<8x16xf32>
    %85 = arith.truncf %79 : vector<8x16xf32> to vector<8x16xbf16>
    %86 = vector.extract_strided_slice %71 {offsets = [0, 0, 0], sizes = [1, 16, 16], strides = [1, 1, 1]} : vector<3x16x16xbf16> to vector<1x16x16xbf16>
    %87 = vector.shape_cast %86 : vector<1x16x16xbf16> to vector<16x16xbf16>
    %cst_40 = arith.constant dense<0.000000e+00> : vector<8x16xf32>
    %88 = tpu.matmul %85, %87, %cst_40 {dimension_numbers = #tpu.dot_dimension_numbers<[1], [0], [0], [1], [0, 0, 1, 1], [], []>} : vector<8x16xbf16>, vector<16x16xbf16>, vector<8x16xf32> -> vector<8x16xf32>
    %89 = arith.truncf %70 : vector<8x16xf32> to vector<8x16xbf16>
    %90 = vector.extract_strided_slice %71 {offsets = [1, 0, 0], sizes = [1, 16, 16], strides = [1, 1, 1]} : vector<3x16x16xbf16> to vector<1x16x16xbf16>
    %91 = vector.shape_cast %90 : vector<1x16x16xbf16> to vector<16x16xbf16>
    %cst_41 = arith.constant dense<0.000000e+00> : vector<8x16xf32>
    %92 = tpu.matmul %89, %91, %cst_41 {dimension_numbers = #tpu.dot_dimension_numbers<[1], [0], [0], [1], [0, 0, 1, 1], [], []>} : vector<8x16xbf16>, vector<16x16xbf16>, vector<8x16xf32> -> vector<8x16xf32>
    %93 = arith.addf %88, %92 : vector<8x16xf32>
    %94 = arith.truncf %84 : vector<8x16xf32> to vector<8x16xbf16>
    %95 = vector.extract_strided_slice %71 {offsets = [2, 0, 0], sizes = [1, 16, 16], strides = [1, 1, 1]} : vector<3x16x16xbf16> to vector<1x16x16xbf16>
    %96 = vector.shape_cast %95 : vector<1x16x16xbf16> to vector<16x16xbf16>
    %cst_42 = arith.constant dense<0.000000e+00> : vector<8x16xf32>
    %97 = tpu.matmul %94, %96, %cst_42 {dimension_numbers = #tpu.dot_dimension_numbers<[1], [0], [0], [1], [0, 0, 1, 1], [], []>} : vector<8x16xbf16>, vector<16x16xbf16>, vector<8x16xf32> -> vector<8x16xf32>
    %98 = arith.addf %93, %97 : vector<8x16xf32>
    %99 = vector.broadcast %72 : vector<1x16xf32> to vector<8x16xf32>
    %100 = arith.addf %98, %99 : vector<8x16xf32>
    %cst_43 = arith.constant dense<0.000000e+00> : vector<8xf32>
    %101 = vector.multi_reduction <add>, %100, %cst_43 [1] : vector<8x16xf32> to vector<8xf32>
    %102 = vector.shape_cast %101 : vector<8xf32> to vector<8x1xf32>
    %cst_44 = arith.constant 1.600000e+01 : f32
    %103 = vector.broadcast %cst_44 : f32 to vector<8x1xf32>
    %104 = arith.divf %102, %103 : vector<8x1xf32>
    %105 = vector.broadcast %104 : vector<8x1xf32> to vector<8x16xf32>
    %106 = arith.subf %100, %105 : vector<8x16xf32>
    %107 = arith.mulf %106, %106 : vector<8x16xf32>
    %cst_45 = arith.constant dense<0.000000e+00> : vector<8xf32>
    %108 = vector.multi_reduction <add>, %107, %cst_45 [1] : vector<8x16xf32> to vector<8xf32>
    %109 = vector.shape_cast %108 : vector<8xf32> to vector<8x1xf32>
    %cst_46 = arith.constant 0.0666666701 : f32
    %110 = vector.broadcast %cst_46 : f32 to vector<8x1xf32>
    %111 = arith.mulf %109, %110 : vector<8x1xf32>
    %112 = math.sqrt %111 : vector<8x1xf32>
    %cst_47 = arith.constant 9.99999997E-7 : f32
    %113 = vector.broadcast %cst_47 : f32 to vector<8x1xf32>
    %114 = arith.addf %112, %113 : vector<8x1xf32>
    %115 = tpu.reciprocal %114 {approx = true} : vector<8x1xf32> -> vector<8x1xf32>
    %116 = vector.broadcast %73 : vector<1x16xf32> to vector<8x16xf32>
    %117 = arith.mulf %116, %106 : vector<8x16xf32>
    %118 = vector.broadcast %115 : vector<8x1xf32> to vector<8x16xf32>
    %119 = arith.mulf %117, %118 : vector<8x16xf32>
    %120 = vector.broadcast %74 : vector<1x16xf32> to vector<8x16xf32>
    %121 = arith.addf %119, %120 : vector<8x16xf32>
    %cst_48 = arith.constant 5.000000e-01 : f32
    %122 = vector.broadcast %cst_48 : f32 to vector<8x16xf32>
    %123 = arith.mulf %122, %121 : vector<8x16xf32>
    %cst_49 = arith.constant 0.707106769 : f32
    %124 = vector.broadcast %cst_49 : f32 to vector<8x16xf32>
    %125 = arith.mulf %121, %124 : vector<8x16xf32>
    %126 = math.erf %125 : vector<8x16xf32>
    %cst_50 = arith.constant 1.000000e+00 : f32
    %127 = vector.broadcast %cst_50 : f32 to vector<8x16xf32>
    %128 = arith.addf %127, %126 : vector<8x16xf32>
    %129 = arith.mulf %123, %128 : vector<8x16xf32>
    %c0_51 = arith.constant 0 : index
    %c0_52 = arith.constant 0 : index
    %c0_53 = arith.constant 0 : index
    %130 = vector.load %arg10[%c0_51, %c0_52, %c0_53] : memref<1x8x16xf32, #tpu.memory_space<vmem>>, vector<1x8x16xf32>
    %131 = vector.shape_cast %130 : vector<1x8x16xf32> to vector<8x16xf32>
    %132 = vector.shape_cast %129 : vector<8x16xf32> to vector<1x8x16xf32>
    tpu.vector_store %arg10[%c0_51, %c0_52, %c0_53], %132 {strides = array<i32>} : memref<1x8x16xf32, #tpu.memory_space<vmem>>, vector<1x8x16xf32>,
    return
  }
  func.func @transform_0(%arg0: i32) -> (i32, i32, i32) {
    %c0_i32 = arith.constant 0 : i32
    %c0_i32_0 = arith.constant 0 : i32
    %c0_i32_1 = arith.constant 0 : i32
    return %arg0, %c0_i32, %c0_i32_0 : i32, i32, i32
  }
  func.func @transform_1(%arg0: i32) -> (i32, i32, i32) {
    %c0_i32 = arith.constant 0 : i32
    %c0_i32_0 = arith.constant 0 : i32
    %c0_i32_1 = arith.constant 0 : i32
    %c0_i32_2 = arith.constant 0 : i32
    return %c0_i32, %c0_i32_0, %c0_i32_1 : i32, i32, i32
  }
  func.func @transform_2(%arg0: i32) -> (i32, i32) {
    %c0_i32 = arith.constant 0 : i32
    %c0_i32_0 = arith.constant 0 : i32
    %c0_i32_1 = arith.constant 0 : i32
    return %c0_i32, %c0_i32_0 : i32, i32
  }
  func.func @transform_3(%arg0: i32) -> (i32, i32) {
    %c0_i32 = arith.constant 0 : i32
    %c0_i32_0 = arith.constant 0 : i32
    %c0_i32_1 = arith.constant 0 : i32
    return %c0_i32, %c0_i32_0 : i32, i32
  }
  func.func @transform_4(%arg0: i32) -> (i32, i32) {
    %c0_i32 = arith.constant 0 : i32
    %c0_i32_0 = arith.constant 0 : i32
    %c0_i32_1 = arith.constant 0 : i32
    return %c0_i32, %c0_i32_0 : i32, i32
  }
  func.func @transform_5(%arg0: i32) -> (i32, i32, i32) {
    %c0_i32 = arith.constant 0 : i32
    %c0_i32_0 = arith.constant 0 : i32
    %c0_i32_1 = arith.constant 0 : i32
    %c0_i32_2 = arith.constant 0 : i32
    return %c0_i32, %c0_i32_0, %c0_i32_1 : i32, i32, i32
  }
  func.func @transform_6(%arg0: i32) -> (i32, i32) {
    %c0_i32 = arith.constant 0 : i32
    %c0_i32_0 = arith.constant 0 : i32
    %c0_i32_1 = arith.constant 0 : i32
    return %c0_i32, %c0_i32_0 : i32, i32
  }
  func.func @transform_7(%arg0: i32) -> (i32, i32) {
    %c0_i32 = arith.constant 0 : i32
    %c0_i32_0 = arith.constant 0 : i32
    %c0_i32_1 = arith.constant 0 : i32
    return %c0_i32, %c0_i32_0 : i32, i32
  }
  func.func @transform_8(%arg0: i32) -> (i32, i32) {
    %c0_i32 = arith.constant 0 : i32
    %c0_i32_0 = arith.constant 0 : i32
    %c0_i32_1 = arith.constant 0 : i32
    return %c0_i32, %c0_i32_0 : i32, i32
  }
  func.func @transform_9(%arg0: i32) -> (i32, i32, i32) {
    %c0_i32 = arith.constant 0 : i32
    %c0_i32_0 = arith.constant 0 : i32
    %c0_i32_1 = arith.constant 0 : i32
    return %arg0, %c0_i32, %c0_i32_0 : i32, i32, i32
  }
}

</mosaic_0001>

<llo_original>
// kernel: downsampling.1
$region0: #{downsampling.1}
  #allocation0 [shape = 'u32[]', space=smem, size = 0x4, offset = 0x4, fixed_abs, tag = 'smem constant byte address 0x4 - core index']
  #allocation1 [shape = 'u32[144,128]{1,0:T(1,128)}', space=vmem, size = 0x12000, scoped, tag = 'internal scratch']
  %s0 = inlined_call_operand.vmem [shape: f32[2,16,8], index: 0, kind: input, shape index: {}]
  %s1 = inlined_call_operand.vmem [shape: bf16[3,8,16], index: 1, kind: input, shape index: {}]
  %s2 = inlined_call_operand.vmem [shape: f32[1,16], index: 2, kind: input, shape index: {}]
  %s3 = inlined_call_operand.vmem [shape: f32[1,16], index: 3, kind: input, shape index: {}]
  %s4 = inlined_call_operand.vmem [shape: f32[1,16], index: 4, kind: input, shape index: {}]
  %s5 = inlined_call_operand.vmem [shape: bf16[3,16,16], index: 5, kind: input, shape index: {}]
  %s6 = inlined_call_operand.vmem [shape: f32[1,16], index: 6, kind: input, shape index: {}]
  %s7 = inlined_call_operand.vmem [shape: f32[1,16], index: 7, kind: input, shape index: {}]
  %s8 = inlined_call_operand.vmem [shape: f32[1,16], index: 8, kind: input, shape index: {}]
  %s9 = inlined_call_operand.hbm [shape: f32[2,8,16], index: 9, kind: output, shape index: {}]
  %s10 = sld [smem:[#allocation0]]
  $region69: #{downsampling.1} parent=0
    _
  %s12 = ssub.s32 1, %s10
  %s13 = scalar_select 0, %s12, %s10
  $region1: #{downsampling.1} parent=0
    #allocation2 [shape = 'u8[8192]{0}', space=vmem, size = 0x2000, scoped, tag = 'output window, operand 0']
    #allocation3 [shape = 's32[2]{0}', space=sflag, size = 0x8, scoped, tag = 'scoped memory for downsampling.1']
    %14 = vsyncpa [#allocation3], 0
    %s15 = scalar_lea.sflag [#allocation3], 1
    %16 = vsyncpa %s15, 0
    loop: start=0, step=1, limit=4
    $region2: #{downsampling.1} parent=1 // loop_pre_header
      _
    $region3: #{downsampling.1} parent=1 // loop_header
      %s18 = sphi 0, %s22
      %p19 = scmp.ge.s32.totalorder %s18, 4
      %s28 = sphi 0, %s30
      %s31 = sphi 0, %s28
      %s32 = sphi 0, %s31
      %s48 = sphi 0, %s32
      %s52 = sphi 0, %s52
      %s54 = sphi 0, %s52
      %s55 = sphi 0, %s54
      %s69 = sphi 0, %s55
      %s73 = sphi 0, %s73
      %s75 = sphi 0, %s73
      %s76 = sphi 0, %s75
      %s90 = sphi 0, %s76
      %s94 = sphi 0, %s94
      %s96 = sphi 0, %s94
      %s97 = sphi 0, %s96
      %s111 = sphi 0, %s97
      %s115 = sphi 0, %s115
      %s117 = sphi 0, %s115
      %s118 = sphi 0, %s117
      %s132 = sphi 0, %s118
      %s136 = sphi 0, %s136
      %s138 = sphi 0, %s136
      %s139 = sphi 0, %s138
      %s153 = sphi 0, %s139
      %s157 = sphi 0, %s157
      %s159 = sphi 0, %s157
      %s160 = sphi 0, %s159
      %s174 = sphi 0, %s160
      %s178 = sphi 0, %s178
      %s180 = sphi 0, %s178
      %s181 = sphi 0, %s180
      %s195 = sphi 0, %s181
      %s199 = sphi 0, %s199
      %s201 = sphi 0, %s199
      %s202 = sphi 0, %s201
      %s216 = sphi 0, %s202
      %s222 = sphi 0, %s224
      %s225 = sphi 0, %s222
      %s226 = sphi 0, %s225
      %s242 = sphi 0, %s226
    $region4: #{downsampling.1} parent=1 // loop_header_branch
      %21 = sbr.rel (%p19) target = $region8
    $region5: #{downsampling.1} parent=1 // loop_body
      %s23 = ssub.s32 %s18, 1
      %s24 = ssub.s32 %s18, 2
      %s25 = sadd.s32 %s18, 1
      %s26 = ssub.s32 %s18, %s25
      %p27 = scmp.eq.s32.totalorder %s26, 0
      %s29 = sadd.s32 %s28, 1
      %s30 = scalar_select %p27, %s28, %s29
      %p33 = pneg %p27
      %p34 = scmp.eq.s32.totalorder %s18, 1
      %p35 = por %p33, %p34
      %p36 = scmp.ne.s32.totalorder %s28, %s31
      %p37 = scmp.eq.s32.totalorder %s18, 0
      %p38 = por %p36, %p37
      %p39 = scmp.ne.s32.totalorder %s28, %s31
      %p40 = scmp.eq.s32.totalorder %s23, 1
      %p41 = por %p39, %p40
      %p42 = scmp.ne.s32.totalorder %s31, %s32
      %p43 = scmp.eq.s32.totalorder %s23, 0
      %p44 = por %p42, %p43
      %p45 = scmp.ne.s32.totalorder %s31, %s32
      %p46 = scmp.eq.s32.totalorder %s24, 1
      %p47 = por %p45, %p46
      %p49 = scmp.ne.s32.totalorder %s32, %s48
      %p50 = scmp.eq.s32.totalorder %s24, 0
      %p51 = por %p49, %p50
      %s53 = sadd.s32 %s52, 1
      %p56 = scmp.eq.s32.totalorder %s18, 1
      %p57 = scmp.ne.s32.totalorder %s52, %s54
      %p58 = scmp.eq.s32.totalorder %s18, 0
      %p59 = por %p57, %p58
      %p60 = scmp.ne.s32.totalorder %s52, %s54
      %p61 = scmp.eq.s32.totalorder %s23, 1
      %p62 = por %p60, %p61
      %p63 = scmp.ne.s32.totalorder %s54, %s55
      %p64 = scmp.eq.s32.totalorder %s23, 0
      %p65 = por %p63, %p64
      %p66 = scmp.ne.s32.totalorder %s54, %s55
      %p67 = scmp.eq.s32.totalorder %s24, 1
      %p68 = por %p66, %p67
      %p70 = scmp.ne.s32.totalorder %s55, %s69
      %p71 = scmp.eq.s32.totalorder %s24, 0
      %p72 = por %p70, %p71
      %s74 = sadd.s32 %s73, 1
      %p77 = scmp.eq.s32.totalorder %s18, 1
      %p78 = scmp.ne.s32.totalorder %s73, %s75
      %p79 = scmp.eq.s32.totalorder %s18, 0
      %p80 = por %p78, %p79
      %p81 = scmp.ne.s32.totalorder %s73, %s75
      %p82 = scmp.eq.s32.totalorder %s23, 1
      %p83 = por %p81, %p82
      %p84 = scmp.ne.s32.totalorder %s75, %s76
      %p85 = scmp.eq.s32.totalorder %s23, 0
      %p86 = por %p84, %p85
      %p87 = scmp.ne.s32.totalorder %s75, %s76
      %p88 = scmp.eq.s32.totalorder %s24, 1
      %p89 = por %p87, %p88
      %p91 = scmp.ne.s32.totalorder %s76, %s90
      %p92 = scmp.eq.s32.totalorder %s24, 0
      %p93 = por %p91, %p92
      %s95 = sadd.s32 %s94, 1
      %p98 = scmp.eq.s32.totalorder %s18, 1
      %p99 = scmp.ne.s32.totalorder %s94, %s96
      %p100 = scmp.eq.s32.totalorder %s18, 0
      %p101 = por %p99, %p100
      %p102 = scmp.ne.s32.totalorder %s94, %s96
      %p103 = scmp.eq.s32.totalorder %s23, 1
      %p104 = por %p102, %p103
      %p105 = scmp.ne.s32.totalorder %s96, %s97
      %p106 = scmp.eq.s32.totalorder %s23, 0
      %p107 = por %p105, %p106
      %p108 = scmp.ne.s32.totalorder %s96, %s97
      %p109 = scmp.eq.s32.totalorder %s24, 1
      %p110 = por %p108, %p109
      %p112 = scmp.ne.s32.totalorder %s97, %s111
      %p113 = scmp.eq.s32.totalorder %s24, 0
      %p114 = por %p112, %p113
      %s116 = sadd.s32 %s115, 1
      %p119 = scmp.eq.s32.totalorder %s18, 1
      %p120 = scmp.ne.s32.totalorder %s115, %s117
      %p121 = scmp.eq.s32.totalorder %s18, 0
      %p122 = por %p120, %p121
      %p123 = scmp.ne.s32.totalorder %s115, %s117
      %p124 = scmp.eq.s32.totalorder %s23, 1
      %p125 = por %p123, %p124
      %p126 = scmp.ne.s32.totalorder %s117, %s118
      %p127 = scmp.eq.s32.totalorder %s23, 0
      %p128 = por %p126, %p127
      %p129 = scmp.ne.s32.totalorder %s117, %s118
      %p130 = scmp.eq.s32.totalorder %s24, 1
      %p131 = por %p129, %p130
      %p133 = scmp.ne.s32.totalorder %s118, %s132
      %p134 = scmp.eq.s32.totalorder %s24, 0
      %p135 = por %p133, %p134
      %s137 = sadd.s32 %s136, 1
      %p140 = scmp.eq.s32.totalorder %s18, 1
      %p141 = scmp.ne.s32.totalorder %s136, %s138
      %p142 = scmp.eq.s32.totalorder %s18, 0
      %p143 = por %p141, %p142
      %p144 = scmp.ne.s32.totalorder %s136, %s138
      %p145 = scmp.eq.s32.totalorder %s23, 1
      %p146 = por %p144, %p145
      %p147 = scmp.ne.s32.totalorder %s138, %s139
      %p148 = scmp.eq.s32.totalorder %s23, 0
      %p149 = por %p147, %p148
      %p150 = scmp.ne.s32.totalorder %s138, %s139
      %p151 = scmp.eq.s32.totalorder %s24, 1
      %p152 = por %p150, %p151
      %p154 = scmp.ne.s32.totalorder %s139, %s153
      %p155 = scmp.eq.s32.totalorder %s24, 0
      %p156 = por %p154, %p155
      %s158 = sadd.s32 %s157, 1
      %p161 = scmp.eq.s32.totalorder %s18, 1
      %p162 = scmp.ne.s32.totalorder %s157, %s159
      %p163 = scmp.eq.s32.totalorder %s18, 0
      %p164 = por %p162, %p163
      %p165 = scmp.ne.s32.totalorder %s157, %s159
      %p166 = scmp.eq.s32.totalorder %s23, 1
      %p167 = por %p165, %p166
      %p168 = scmp.ne.s32.totalorder %s159, %s160
      %p169 = scmp.eq.s32.totalorder %s23, 0
      %p170 = por %p168, %p169
      %p171 = scmp.ne.s32.totalorder %s159, %s160
      %p172 = scmp.eq.s32.totalorder %s24, 1
      %p173 = por %p171, %p172
      %p175 = scmp.ne.s32.totalorder %s160, %s174
      %p176 = scmp.eq.s32.totalorder %s24, 0
      %p177 = por %p175, %p176
      %s179 = sadd.s32 %s178, 1
      %p182 = scmp.eq.s32.totalorder %s18, 1
      %p183 = scmp.ne.s32.totalorder %s178, %s180
      %p184 = scmp.eq.s32.totalorder %s18, 0
      %p185 = por %p183, %p184
      %p186 = scmp.ne.s32.totalorder %s178, %s180
      %p187 = scmp.eq.s32.totalorder %s23, 1
      %p188 = por %p186, %p187
      %p189 = scmp.ne.s32.totalorder %s180, %s181
      %p190 = scmp.eq.s32.totalorder %s23, 0
      %p191 = por %p189, %p190
      %p192 = scmp.ne.s32.totalorder %s180, %s181
      %p193 = scmp.eq.s32.totalorder %s24, 1
      %p194 = por %p192, %p193
      %p196 = scmp.ne.s32.totalorder %s181, %s195
      %p197 = scmp.eq.s32.totalorder %s24, 0
      %p198 = por %p196, %p197
      %s200 = sadd.s32 %s199, 1
      %p203 = scmp.eq.s32.totalorder %s18, 1
      %p204 = scmp.ne.s32.totalorder %s199, %s201
      %p205 = scmp.eq.s32.totalorder %s18, 0
      %p206 = por %p204, %p205
      %p207 = scmp.ne.s32.totalorder %s199, %s201
      %p208 = scmp.eq.s32.totalorder %s23, 1
      %p209 = por %p207, %p208
      %p210 = scmp.ne.s32.totalorder %s201, %s202
      %p211 = scmp.eq.s32.totalorder %s23, 0
      %p212 = por %p210, %p211
      %p213 = scmp.ne.s32.totalorder %s201, %s202
      %p214 = scmp.eq.s32.totalorder %s24, 1
      %p215 = por %p213, %p214
      %p217 = scmp.ne.s32.totalorder %s202, %s216
      %p218 = scmp.eq.s32.totalorder %s24, 0
      %p219 = por %p217, %p218
      %s220 = ssub.s32 %s18, %s25
      %p221 = scmp.eq.s32.totalorder %s220, 0
      %s223 = sadd.s32 %s222, 1
      %s224 = scalar_select %p221, %s222, %s223
      %p227 = pneg %p221
      %p228 = scmp.eq.s32.totalorder %s18, 1
      %p229 = por %p227, %p228
      %p230 = scmp.ne.s32.totalorder %s222, %s225
      %p231 = scmp.eq.s32.totalorder %s18, 0
      %p232 = por %p230, %p231
      %p233 = scmp.ne.s32.totalorder %s222, %s225
      %p234 = scmp.eq.s32.totalorder %s23, 1
      %p235 = por %p233, %p234
      %p236 = scmp.ne.s32.totalorder %s225, %s226
      %p237 = scmp.eq.s32.totalorder %s23, 0
      %p238 = por %p236, %p237
      %p239 = scmp.ne.s32.totalorder %s225, %s226
      %p240 = scmp.eq.s32.totalorder %s24, 1
      %p241 = por %p239, %p240
      %p243 = scmp.ne.s32.totalorder %s226, %s242
      %p244 = scmp.eq.s32.totalorder %s24, 0
      %p245 = por %p243, %p244
      %p246 = scmp.le.s32.totalorder 1, %s18
      %p247 = scmp.lt.s32.totalorder %s18, 3
      %p248 = pnand %p246, %p247
      %p249 = pneg %p248
      // Predicated region
      $region9: #{downsampling.1} parent=5 // pred_check
        _
      $region10: #{downsampling.1} parent=5 // pred_check_branch
        %251 = sbr.rel (%p248) target = $region12
      $region11: #{downsampling.1} parent=5 // pred_region
        %s252 = ssub.s32 %s18, 1
        // Predicated region
        $region13: #{downsampling.1} parent=11 // pred_check
          %p253 = pneg %p65
        $region14: #{downsampling.1} parent=11 // pred_check_branch
          %255 = sbr.rel (%p253) target = $region16
        $region15: #{downsampling.1} parent=11 // pred_region
          _
        $region16: #{downsampling.1} parent=11 // pred_fallthru
          _
        // Predicated region
        $region17: #{downsampling.1} parent=11 // pred_check
          %p256 = pneg %p86
        $region18: #{downsampling.1} parent=11 // pred_check_branch
          %258 = sbr.rel (%p256) target = $region20
        $region19: #{downsampling.1} parent=11 // pred_region
          _
        $region20: #{downsampling.1} parent=11 // pred_fallthru
          _
        // Predicated region
        $region21: #{downsampling.1} parent=11 // pred_check
          %p259 = pneg %p107
        $region22: #{downsampling.1} parent=11 // pred_check_branch
          %261 = sbr.rel (%p259) target = $region24
        $region23: #{downsampling.1} parent=11 // pred_region
          _
        $region24: #{downsampling.1} parent=11 // pred_fallthru
          _
        // Predicated region
        $region25: #{downsampling.1} parent=11 // pred_check
          %p262 = pneg %p128
        $region26: #{downsampling.1} parent=11 // pred_check_branch
          %264 = sbr.rel (%p262) target = $region28
        $region27: #{downsampling.1} parent=11 // pred_region
          _
        $region28: #{downsampling.1} parent=11 // pred_fallthru
          _
        // Predicated region
        $region29: #{downsampling.1} parent=11 // pred_check
          %p265 = pneg %p149
        $region30: #{downsampling.1} parent=11 // pred_check_branch
          %267 = sbr.rel (%p265) target = $region32
        $region31: #{downsampling.1} parent=11 // pred_region
          _
        $region32: #{downsampling.1} parent=11 // pred_fallthru
          _
        // Predicated region
        $region33: #{downsampling.1} parent=11 // pred_check
          %p268 = pneg %p170
        $region34: #{downsampling.1} parent=11 // pred_check_branch
          %270 = sbr.rel (%p268) target = $region36
        $region35: #{downsampling.1} parent=11 // pred_region
          _
        $region36: #{downsampling.1} parent=11 // pred_fallthru
          _
        // Predicated region
        $region37: #{downsampling.1} parent=11 // pred_check
          %p271 = pneg %p191
        $region38: #{downsampling.1} parent=11 // pred_check_branch
          %273 = sbr.rel (%p271) target = $region40
        $region39: #{downsampling.1} parent=11 // pred_region
          _
        $region40: #{downsampling.1} parent=11 // pred_fallthru
          _
        // Predicated region
        $region41: #{downsampling.1} parent=11 // pred_check
          %p274 = pneg %p212
        $region42: #{downsampling.1} parent=11 // pred_check_branch
          %276 = sbr.rel (%p274) target = $region44
        $region43: #{downsampling.1} parent=11 // pred_region
          _
        $region44: #{downsampling.1} parent=11 // pred_fallthru
          _
      $region12: #{downsampling.1} parent=5 // pred_fallthru
        _
      %p277 = scmp.lt.s32.totalorder %s18, 2
      // Predicated region
      $region45: #{downsampling.1} parent=5 // pred_check
        %p278 = pneg %p277
      $region46: #{downsampling.1} parent=5 // pred_check_branch
        %280 = sbr.rel (%p278) target = $region48
      $region47: #{downsampling.1} parent=5 // pred_region
        // Predicated region
        $region49: #{downsampling.1} parent=47 // pred_check
          %p281 = pneg %p38
        $region50: #{downsampling.1} parent=47 // pred_check_branch
          %283 = sbr.rel (%p281) target = $region52
        $region51: #{downsampling.1} parent=47 // pred_region
          %p284 = scmp.lt.s32.totalorder %s18, 1
          %s285 = scalar_select %p284, %s18, 1
          %s286 = smul.addr %s285, 2
          %s287 = smul.addr %s286, 8
          %s288 = scalar_lea.vmem %s0, %s287
        $region52: #{downsampling.1} parent=47 // pred_fallthru
          _
      $region48: #{downsampling.1} parent=5 // pred_fallthru
        _
      %p289 = scmp.le.s32.totalorder 1, %s18
      %p290 = scmp.lt.s32.totalorder %s18, 3
      %p291 = pnand %p289, %p290
      %p292 = pneg %p291
      // Predicated region
      $region53: #{downsampling.1} parent=5 // pred_check
        _
      $region54: #{downsampling.1} parent=5 // pred_check_branch
        %294 = sbr.rel (%p291) target = $region56
      $region55: #{downsampling.1} parent=5 // pred_region
        %s295 = ssub.s32 %s18, 1
        %p296 = scmp.lt.s32.totalorder %s23, 1
        %s297 = scalar_select %p296, %s23, 1
        %s298 = smul.addr %s297, 2
        %s299 = smul.addr %s298, 8
        %s300 = scalar_lea.vmem %s0, %s299
        %p301 = pneg %p44
        %p302 = pneg %p41
        %p303 = pneg %p65
        %p304 = pneg %p62
        %p305 = pneg %p86
        %p306 = pneg %p83
        %p307 = pneg %p107
        %p308 = pneg %p104
        %p309 = pneg %p128
        %p310 = pneg %p125
        %p311 = pneg %p149
        %p312 = pneg %p146
        %p313 = pneg %p170
        %p314 = pneg %p167
        %p315 = pneg %p191
        %p316 = pneg %p188
        %p317 = pneg %p212
        %p318 = pneg %p209
        %p319 = pneg %p238
        %p320 = pneg %p235
        %s321 = sand.u32 %s225, 1
        %s322 = scalar_lea.sflag [#allocation3], %s321
        %s323 = sand.u32 %s225, 1
        %s324 = smul.addr %s323, 8
        %s325 = scalar_lea.vmem [#allocation2], %s324
        %p326 = scmp.lt.s32.totalorder %s23, 1
        %s327 = scalar_select %p326, %s23, 1
        %s328 = smul.addr %s327, 2
        %s329 = smul.addr %s328, 8
        %s330 = scalar_lea.vmem %s0, %s329
        %v332 = vld [vmem:[%s330] ss:$2 sm:$0xff]
        %s333 = scalar_lea.vmem %s330, 1
        %v334 = vld [vmem:[%s333] ss:$2 sm:$0xff]
        %v335 = vadd.f32 %v332, %v334
        %v336 = vmul.f32 %v335, 0.5
        %v337 = vlaneseq
        %v338 = vshrl.u32 %v337, 7
        %vm339 = vcmp.eq.s32.totalorder %v338, 0
        %vm340 = vcmp.eq.s32.totalorder %v338, 7
        %v341 = vld [vmem:[%s1] sm:$0xf]
        %v342 = vld [vmem:[%s1 + $0x4] sm:$0xf]
        %v343 = vld [vmem:[%s1 + $0x8] sm:$0xf]
        %v344 = vld [vmem:[%s2] sm:$0x1]
        %v345 = vld [vmem:[%s3] sm:$0x1]
        %v346 = vld [vmem:[%s4] sm:$0x1]
        %v347 = vrot.slane %v336, 7
        %v348 = vsel %vm339, 1, 0
        %vm349 = vcmp.eq.s32.totalorder %v348, 1
        %v350 = vsel %vm349, 0.0, %v347
        %v351 = vrot.slane %v336, 1
        %v352 = vsel %vm340, 1, 0
        %vm353 = vcmp.eq.s32.totalorder %v352, 1
        %v354 = vsel %vm353, 0.0, %v351
        %v355 = vpack.c.bf16 %v350, %v350
        %v356 = vpack.c.bf16 %v336, %v336
        %vm357 = vcmask 64512
        %v359 = vsel %vm357, %v356, 0
        %vm361 = vcmask 1043456
        %v363 = vsel %vm361, %v342, 0
        %365 = vmatprep.subr.bf16.mxu0 0
        %366 = vmatpush1.bf16.msra.mxu0 0
        %367 = vmatprep.subr.bf16.mxu0 0
        %368 = vmatpush1.bf16.msra.mxu0 0
        %369 = vmatprep.subr.bf16.mxu0 0
        %370 = vmatpush1.bf16.msra.mxu0 0
        %371 = vmatprep.subr.bf16.mxu0 0
        %372 = vmatpush1.bf16.msra.mxu0 0
        %373 = vmatprep.subr.bf16.mxu0 0
        %374 = vmatpush1.bf16.msra.mxu0 0
        %375 = vmatprep.subr.bf16.mxu0 0
        %376 = vmatpush1.bf16.msra.mxu0 0
        %377 = vmatprep.subr.bf16.mxu0 0
        %378 = vmatpush1.bf16.msra.mxu0 0
        %379 = vmatprep.subr.bf16.mxu0 0
        %380 = vmatpush1.bf16.msra.mxu0 %v363
        %381 = vmatprep.subr.bf16.mxu0 0
        %382 = vmatpush2.bf16.msra.mxu0 0
        %383 = vmatprep.subr.bf16.mxu0 0
        %384 = vmatpush2.bf16.msra.mxu0 0
        %385 = vmatprep.subr.bf16.mxu0 0
        %386 = vmatpush2.bf16.msra.mxu0 0
        %387 = vmatprep.subr.bf16.mxu0 0
        %388 = vmatpush2.bf16.msra.mxu0 0
        %389 = vmatprep.subr.bf16.mxu0 0
        %390 = vmatpush2.bf16.msra.mxu0 0
        %391 = vmatprep.subr.bf16.mxu0 0
        %392 = vmatpush2.bf16.msra.mxu0 0
        %393 = vmatprep.subr.bf16.mxu0 0
        %394 = vmatpush2.bf16.msra.mxu0 0
        %395 = vmatprep.subr.bf16.mxu0 0
        %396 = vmatpush2.bf16.msra.mxu0 0
        %397 = vmatprep.mubr.bf16.mxu0 0
        %398 = vmatmul.mubr.bf16.gmra.mxu0 %v359
        %v399 = vpop.f32.mrf.mxu0
        %v400 = vadd.f32 0.0, %v399
        %v401 = vpop.f32.mrf.mxu0
        %v402 = vpop.f32.mrf.mxu0
        %v403 = vpop.f32.mrf.mxu0
        %404 = vdwg.mxu0
        %v406 = vsel %vm357, %v355, 0
        %v409 = vsel %vm361, %v341, 0
        %411 = vmatprep.subr.bf16.mxu0 0
        %412 = vmatpush1.bf16.msra.mxu0 0
        %413 = vmatprep.subr.bf16.mxu0 0
        %414 = vmatpush1.bf16.msra.mxu0 0
        %415 = vmatprep.subr.bf16.mxu0 0
        %416 = vmatpush1.bf16.msra.mxu0 0
        %417 = vmatprep.subr.bf16.mxu0 0
        %418 = vmatpush1.bf16.msra.mxu0 0
        %419 = vmatprep.subr.bf16.mxu0 0
        %420 = vmatpush1.bf16.msra.mxu0 0
        %421 = vmatprep.subr.bf16.mxu0 0
        %422 = vmatpush1.bf16.msra.mxu0 0
        %423 = vmatprep.subr.bf16.mxu0 0
        %424 = vmatpush1.bf16.msra.mxu0 0
        %425 = vmatprep.subr.bf16.mxu0 0
        %426 = vmatpush1.bf16.msra.mxu0 %v409
        %427 = vmatprep.subr.bf16.mxu0 0
        %428 = vmatpush2.bf16.msra.mxu0 0
        %429 = vmatprep.subr.bf16.mxu0 0
        %430 = vmatpush2.bf16.msra.mxu0 0
        %431 = vmatprep.subr.bf16.mxu0 0
        %432 = vmatpush2.bf16.msra.mxu0 0
        %433 = vmatprep.subr.bf16.mxu0 0
        %434 = vmatpush2.bf16.msra.mxu0 0
        %435 = vmatprep.subr.bf16.mxu0 0
        %436 = vmatpush2.bf16.msra.mxu0 0
        %437 = vmatprep.subr.bf16.mxu0 0
        %438 = vmatpush2.bf16.msra.mxu0 0
        %439 = vmatprep.subr.bf16.mxu0 0
        %440 = vmatpush2.bf16.msra.mxu0 0
        %441 = vmatprep.subr.bf16.mxu0 0
        %442 = vmatpush2.bf16.msra.mxu0 0
        %443 = vmatprep.mubr.bf16.mxu0 0
        %444 = vmatmul.mubr.bf16.gmra.mxu0 %v406
        %v445 = vpop.f32.mrf.mxu0
        %v446 = vadd.f32 %v400, %v445
        %v447 = vpop.f32.mrf.mxu0
        %v448 = vpop.f32.mrf.mxu0
        %v449 = vpop.f32.mrf.mxu0
        %450 = vdwg.mxu0
        %v451 = vpack.c.bf16 %v354, %v354
        %v453 = vsel %vm357, %v451, 0
        %v456 = vsel %vm361, %v343, 0
        %458 = vmatprep.subr.bf16.mxu0 0
        %459 = vmatpush1.bf16.msra.mxu0 0
        %460 = vmatprep.subr.bf16.mxu0 0
        %461 = vmatpush1.bf16.msra.mxu0 0
        %462 = vmatprep.subr.bf16.mxu0 0
        %463 = vmatpush1.bf16.msra.mxu0 0
        %464 = vmatprep.subr.bf16.mxu0 0
        %465 = vmatpush1.bf16.msra.mxu0 0
        %466 = vmatprep.subr.bf16.mxu0 0
        %467 = vmatpush1.bf16.msra.mxu0 0
        %468 = vmatprep.subr.bf16.mxu0 0
        %469 = vmatpush1.bf16.msra.mxu0 0
        %470 = vmatprep.subr.bf16.mxu0 0
        %471 = vmatpush1.bf16.msra.mxu0 0
        %472 = vmatprep.subr.bf16.mxu0 0
        %473 = vmatpush1.bf16.msra.mxu0 %v456
        %474 = vmatprep.subr.bf16.mxu0 0
        %475 = vmatpush2.bf16.msra.mxu0 0
        %476 = vmatprep.subr.bf16.mxu0 0
        %477 = vmatpush2.bf16.msra.mxu0 0
        %478 = vmatprep.subr.bf16.mxu0 0
        %479 = vmatpush2.bf16.msra.mxu0 0
        %480 = vmatprep.subr.bf16.mxu0 0
        %481 = vmatpush2.bf16.msra.mxu0 0
        %482 = vmatprep.subr.bf16.mxu0 0
        %483 = vmatpush2.bf16.msra.mxu0 0
        %484 = vmatprep.subr.bf16.mxu0 0
        %485 = vmatpush2.bf16.msra.mxu0 0
        %486 = vmatprep.subr.bf16.mxu0 0
        %487 = vmatpush2.bf16.msra.mxu0 0
        %488 = vmatprep.subr.bf16.mxu0 0
        %489 = vmatpush2.bf16.msra.mxu0 0
        %490 = vmatprep.mubr.bf16.mxu0 0
        %491 = vmatmul.mubr.bf16.gmra.mxu0 %v453
        %v492 = vpop.f32.mrf.mxu0
        %v493 = vadd.f32 0.0, %v492
        %v494 = vpop.f32.mrf.mxu0
        %v495 = vpop.f32.mrf.mxu0
        %v496 = vpop.f32.mrf.mxu0
        %497 = vdwg.mxu0
        %v498 = vadd.f32 %v446, %v493
        %v500 = vlaneseq
        %v501 = vshrl.u32 %v500, 7
        %v502 = vsub.s32 0, %v501
        %v503 = vrot.slane %v344, %v502
        %v505 = vadd.f32 %v498, %v503
        %vm506 = vcmask 130048
        %v507 = vsel %vm506, %v505, 0.0
        %508 = vadd.xlane.f32.xlu0 %v507
        %v509 = vpop.xlane.xlu0 %508
        %v510 = vrcp.pop 16.0
        %v511 = vmul.f32 %v509, %v510
        %v512 = vsub.f32 %v505, %v511
        %v513 = vmul.f32 %v512, %v512
        %v514 = vsel %vm506, %v513, 0.0
        %515 = vadd.xlane.f32.xlu0 %v514
        %v516 = vpop.xlane.xlu0 %515
        %v517 = vmul.f32 %v516, 0.06666667
        %v518 = vrsqrt.pop %v517
        %v519 = vmul.f32 %v517, %v518
        %vm520 = vcmp.eq.f32.partialorder %v517, inf
        %v521 = vsel %vm520, %v517, %v519
        %vm522 = vcmp.eq.f32.partialorder %v517, 0.0
        %v523 = vand.u32 %v517, 2147483648
        %v524 = vsel %vm522, %v523, %v521
        %v525 = vadd.f32 %v524, 1e-06
        %v526 = vrcp.pop %v525
        %v528 = vlaneseq
        %v529 = vshrl.u32 %v528, 7
        %v530 = vsub.s32 0, %v529
        %v531 = vrot.slane %v345, %v530
        %v533 = vmul.f32 %v531, %v512
        %v534 = vmul.f32 %v533, %v526
        %v536 = vlaneseq
        %v537 = vshrl.u32 %v536, 7
        %v538 = vsub.s32 0, %v537
        %v539 = vrot.slane %v346, %v538
        %v541 = vadd.f32 %v534, %v539
        %v542 = vmul.f32 %v541, 0.5
        %v543 = vmul.f32 %v541, 0.70710677
        %v544 = verf.f32.pop %v543
        %v545 = vadd.f32 %v544, 1.0
        %v546 = vmul.f32 %v542, %v545
        %v547 = vld [vmem:[%s5] sm:$0xf]
        %v548 = vld [vmem:[%s5 + $0x4] sm:$0xf]
        %v549 = vld [vmem:[%s5 + $0x8] sm:$0xf]
        %v550 = vld [vmem:[%s5 + $0xc] sm:$0xf]
        %v551 = vld [vmem:[%s5 + $0x10] sm:$0xf]
        %v552 = vld [vmem:[%s5 + $0x14] sm:$0xf]
        %v553 = vld [vmem:[%s6] sm:$0x1]
        %v554 = vld [vmem:[%s7] sm:$0x1]
        %v555 = vld [vmem:[%s8] sm:$0x1]
        %v556 = vrot.slane %v546, 7
        %v557 = vsel %vm349, 0.0, %v556
        %v558 = vrot.slane %v546, 1
        %v559 = vsel %vm353, 0.0, %v558
        %v560 = vpack.c.bf16 %v557, %v557
        %v561 = vpack.c.bf16 %v546, %v546
        %v564 = vunpack.c.l.b16 %v549
        %v565 = vunpack.c.l.b16 %v550
        %v566 = vpack.c.b16 %v565, %v564
        %v569 = vsel %vm506, %v561, 0
        %571 = vmatprep.subr.bf16.mxu0 0
        %572 = vmatpush1.bf16.msra.mxu0 0
        %573 = vmatprep.subr.bf16.mxu0 0
        %574 = vmatpush1.bf16.msra.mxu0 0
        %575 = vmatprep.subr.bf16.mxu0 0
        %576 = vmatpush1.bf16.msra.mxu0 0
        %577 = vmatprep.subr.bf16.mxu0 0
        %578 = vmatpush1.bf16.msra.mxu0 0
        %579 = vmatprep.subr.bf16.mxu0 0
        %580 = vmatpush1.bf16.msra.mxu0 0
        %581 = vmatprep.subr.bf16.mxu0 0
        %582 = vmatpush1.bf16.msra.mxu0 0
        %583 = vmatprep.subr.bf16.mxu0 0
        %584 = vmatpush1.bf16.msra.mxu0 0
        %585 = vmatprep.subr.bf16.mxu0 0
        %586 = vmatpush1.bf16.msra.mxu0 %v566
        %587 = vmatprep.subr.bf16.mxu0 0
        %588 = vmatpush2.bf16.msra.mxu0 0
        %589 = vmatprep.subr.bf16.mxu0 0
        %590 = vmatpush2.bf16.msra.mxu0 0
        %591 = vmatprep.subr.bf16.mxu0 0
        %592 = vmatpush2.bf16.msra.mxu0 0
        %593 = vmatprep.subr.bf16.mxu0 0
        %594 = vmatpush2.bf16.msra.mxu0 0
        %595 = vmatprep.subr.bf16.mxu0 0
        %596 = vmatpush2.bf16.msra.mxu0 0
        %597 = vmatprep.subr.bf16.mxu0 0
        %598 = vmatpush2.bf16.msra.mxu0 0
        %599 = vmatprep.subr.bf16.mxu0 0
        %600 = vmatpush2.bf16.msra.mxu0 0
        %601 = vmatprep.subr.bf16.mxu0 0
        %602 = vmatpush2.bf16.msra.mxu0 0
        %603 = vmatprep.mubr.bf16.mxu0 0
        %604 = vmatmul.mubr.bf16.gmra.mxu0 %v569
        %v605 = vpop.f32.mrf.mxu0
        %v606 = vadd.f32 0.0, %v605
        %v607 = vpop.f32.mrf.mxu0
        %v608 = vpop.f32.mrf.mxu0
        %v609 = vpop.f32.mrf.mxu0
        %610 = vdwg.mxu0
        %v613 = vunpack.c.l.b16 %v547
        %v614 = vunpack.c.l.b16 %v548
        %v615 = vpack.c.b16 %v614, %v613
        %v618 = vsel %vm506, %v560, 0
        %620 = vmatprep.subr.bf16.mxu0 0
        %621 = vmatpush1.bf16.msra.mxu0 0
        %622 = vmatprep.subr.bf16.mxu0 0
        %623 = vmatpush1.bf16.msra.mxu0 0
        %624 = vmatprep.subr.bf16.mxu0 0
        %625 = vmatpush1.bf16.msra.mxu0 0
        %626 = vmatprep.subr.bf16.mxu0 0
        %627 = vmatpush1.bf16.msra.mxu0 0
        %628 = vmatprep.subr.bf16.mxu0 0
        %629 = vmatpush1.bf16.msra.mxu0 0
        %630 = vmatprep.subr.bf16.mxu0 0
        %631 = vmatpush1.bf16.msra.mxu0 0
        %632 = vmatprep.subr.bf16.mxu0 0
        %633 = vmatpush1.bf16.msra.mxu0 0
        %634 = vmatprep.subr.bf16.mxu0 0
        %635 = vmatpush1.bf16.msra.mxu0 %v615
        %636 = vmatprep.subr.bf16.mxu0 0
        %637 = vmatpush2.bf16.msra.mxu0 0
        %638 = vmatprep.subr.bf16.mxu0 0
        %639 = vmatpush2.bf16.msra.mxu0 0
        %640 = vmatprep.subr.bf16.mxu0 0
        %641 = vmatpush2.bf16.msra.mxu0 0
        %642 = vmatprep.subr.bf16.mxu0 0
        %643 = vmatpush2.bf16.msra.mxu0 0
        %644 = vmatprep.subr.bf16.mxu0 0
        %645 = vmatpush2.bf16.msra.mxu0 0
        %646 = vmatprep.subr.bf16.mxu0 0
        %647 = vmatpush2.bf16.msra.mxu0 0
        %648 = vmatprep.subr.bf16.mxu0 0
        %649 = vmatpush2.bf16.msra.mxu0 0
        %650 = vmatprep.subr.bf16.mxu0 0
        %651 = vmatpush2.bf16.msra.mxu0 0
        %652 = vmatprep.mubr.bf16.mxu0 0
        %653 = vmatmul.mubr.bf16.gmra.mxu0 %v618
        %v654 = vpop.f32.mrf.mxu0
        %v655 = vadd.f32 %v606, %v654
        %v656 = vpop.f32.mrf.mxu0
        %v657 = vpop.f32.mrf.mxu0
        %v658 = vpop.f32.mrf.mxu0
        %659 = vdwg.mxu0
        %v660 = vpack.c.bf16 %v559, %v559
        %v663 = vunpack.c.l.b16 %v551
        %v664 = vunpack.c.l.b16 %v552
        %v665 = vpack.c.b16 %v664, %v663
        %v668 = vsel %vm506, %v660, 0
        %670 = vmatprep.subr.bf16.mxu0 0
        %671 = vmatpush1.bf16.msra.mxu0 0
        %672 = vmatprep.subr.bf16.mxu0 0
        %673 = vmatpush1.bf16.msra.mxu0 0
        %674 = vmatprep.subr.bf16.mxu0 0
        %675 = vmatpush1.bf16.msra.mxu0 0
        %676 = vmatprep.subr.bf16.mxu0 0
        %677 = vmatpush1.bf16.msra.mxu0 0
        %678 = vmatprep.subr.bf16.mxu0 0
        %679 = vmatpush1.bf16.msra.mxu0 0
        %680 = vmatprep.subr.bf16.mxu0 0
        %681 = vmatpush1.bf16.msra.mxu0 0
        %682 = vmatprep.subr.bf16.mxu0 0
        %683 = vmatpush1.bf16.msra.mxu0 0
        %684 = vmatprep.subr.bf16.mxu0 0
        %685 = vmatpush1.bf16.msra.mxu0 %v665
        %686 = vmatprep.subr.bf16.mxu0 0
        %687 = vmatpush2.bf16.msra.mxu0 0
        %688 = vmatprep.subr.bf16.mxu0 0
        %689 = vmatpush2.bf16.msra.mxu0 0
        %690 = vmatprep.subr.bf16.mxu0 0
        %691 = vmatpush2.bf16.msra.mxu0 0
        %692 = vmatprep.subr.bf16.mxu0 0
        %693 = vmatpush2.bf16.msra.mxu0 0
        %694 = vmatprep.subr.bf16.mxu0 0
        %695 = vmatpush2.bf16.msra.mxu0 0
        %696 = vmatprep.subr.bf16.mxu0 0
        %697 = vmatpush2.bf16.msra.mxu0 0
        %698 = vmatprep.subr.bf16.mxu0 0
        %699 = vmatpush2.bf16.msra.mxu0 0
        %700 = vmatprep.subr.bf16.mxu0 0
        %701 = vmatpush2.bf16.msra.mxu0 0
        %702 = vmatprep.mubr.bf16.mxu0 0
        %703 = vmatmul.mubr.bf16.gmra.mxu0 %v668
        %v704 = vpop.f32.mrf.mxu0
        %v705 = vadd.f32 0.0, %v704
        %v706 = vpop.f32.mrf.mxu0
        %v707 = vpop.f32.mrf.mxu0
        %v708 = vpop.f32.mrf.mxu0
        %709 = vdwg.mxu0
        %v710 = vadd.f32 %v655, %v705
        %v712 = vlaneseq
        %v713 = vshrl.u32 %v712, 7
        %v714 = vsub.s32 0, %v713
        %v715 = vrot.slane %v553, %v714
        %v717 = vadd.f32 %v710, %v715
        %v718 = vsel %vm506, %v717, 0.0
        %719 = vadd.xlane.f32.xlu0 %v718
        %v720 = vpop.xlane.xlu0 %719
        %v721 = vmul.f32 %v720, %v510
        %v722 = vsub.f32 %v717, %v721
        %v723 = vmul.f32 %v722, %v722
        %v724 = vsel %vm506, %v723, 0.0
        %725 = vadd.xlane.f32.xlu0 %v724
        %v726 = vpop.xlane.xlu0 %725
        %v727 = vmul.f32 %v726, 0.06666667
        %v728 = vrsqrt.pop %v727
        %v729 = vmul.f32 %v727, %v728
        %vm730 = vcmp.eq.f32.partialorder %v727, inf
        %v731 = vsel %vm730, %v727, %v729
        %vm732 = vcmp.eq.f32.partialorder %v727, 0.0
        %v733 = vand.u32 %v727, 2147483648
        %v734 = vsel %vm732, %v733, %v731
        %v735 = vadd.f32 %v734, 1e-06
        %v736 = vrcp.pop %v735
        %v738 = vlaneseq
        %v739 = vshrl.u32 %v738, 7
        %v740 = vsub.s32 0, %v739
        %v741 = vrot.slane %v554, %v740
        %v743 = vmul.f32 %v741, %v722
        %v744 = vmul.f32 %v743, %v736
        %v746 = vlaneseq
        %v747 = vshrl.u32 %v746, 7
        %v748 = vsub.s32 0, %v747
        %v749 = vrot.slane %v555, %v748
        %v751 = vadd.f32 %v744, %v749
        %v752 = vmul.f32 %v751, 0.5
        %v753 = vmul.f32 %v751, 0.70710677
        %v754 = verf.f32.pop %v753
        %v755 = vadd.f32 %v754, 1.0
        %v756 = vmul.f32 %v752, %v755
        %757 = vst.msk [vmem:[%s325] sm:$0xff] %vm506, %v756
        %s758 = sand.u32 %s225, 1
        %s759 = scalar_lea.sflag [#allocation3], %s758
        %s760 = sand.u32 %s225, 1
        %s761 = smul.addr %s760, 8
        %s762 = scalar_lea.vmem [#allocation2], %s761
        // Predicated region
        $region57: #{downsampling.1} parent=55 // pred_check
          %p763 = pneg %p235
        $region58: #{downsampling.1} parent=55 // pred_check_branch
          %765 = sbr.rel (%p763) target = $region60
        $region59: #{downsampling.1} parent=55 // pred_region
          %s767 = ssub.s32 128, 128
          %768 = vsyncadd %s759, %s767
          %s769 = smul.addr %s23, 128
          %s770 = scalar_lea.hbm %s9, %s769
          %s772 = sshll.u32 %s762, 4
          %s773 = int_to_ptr.vmem [resolvable:$true] %s772
          %775 = dma.vmem_to_hbm [thread:$0]  %s773, 128, %s770, %s759
        $region60: #{downsampling.1} parent=55 // pred_fallthru
          _
      $region56: #{downsampling.1} parent=5 // pred_fallthru
        _
      %p776 = scmp.le.s32.totalorder 2, %s18
      // Predicated region
      $region61: #{downsampling.1} parent=5 // pred_check
        %p777 = pneg %p776
      $region62: #{downsampling.1} parent=5 // pred_check_branch
        %779 = sbr.rel (%p777) target = $region64
      $region63: #{downsampling.1} parent=5 // pred_region
        %s780 = ssub.s32 %s18, 2
        // Predicated region
        $region65: #{downsampling.1} parent=63 // pred_check
          %p781 = pneg %p241
        $region66: #{downsampling.1} parent=63 // pred_check_branch
          %783 = sbr.rel (%p781) target = $region68
        $region67: #{downsampling.1} parent=63 // pred_region
          %s784 = sand.u32 %s226, 1
          %s785 = scalar_lea.sflag [#allocation3], %s784
          %s786 = sand.u32 %s226, 1
          %s787 = smul.addr %s786, 8
          %s788 = scalar_lea.vmem [#allocation2], %s787
          %789 = dma.done %s785, 128
        $region68: #{downsampling.1} parent=63 // pred_fallthru
          _
      $region64: #{downsampling.1} parent=5 // pred_fallthru
        _
    $region6: #{downsampling.1} parent=1 // loop_footer
      %s22 = sadd.s32 1, %s18
    $region7: #{downsampling.1} parent=1 // loop_footer_branch
      %17 = sbr.rel target = $region3
    $region8: #{downsampling.1} parent=1 // loop_exit
      _
    %790 = vsyncpa [#allocation3], 1
    %s791 = scalar_lea.sflag [#allocation3], 1
    %792 = vsyncpa %s791, 1

</llo_original>
